<compile_context>
chip_gen: v7x
topology: tpu7x:2x2x1
jax: 0.10.0
libtpu: 0.0.40
codegen_flags: <defaults>
</compile_context>

<pallas_src>
import math

import jax
import jax.numpy as jnp
from jax.experimental import pallas as pl
from jax.experimental.pallas import tpu as pltpu

SEQ = 8          # seq_length (also the attn Linear output width)
BATCH = 2
IN_DIM = 16      # input_dim
HID = 32         # hidden_size
OUT_DIM = 8      # output_dim


def lstm_attention_kernel(x_ref, hc0_ref, lstm_w_ref, lstm_b_ref, head_ref,
                          out_ref):
    # x_ref:      (SEQ*BATCH, IN_DIM) bf16, rows time-major (row = t*BATCH + b)
    # hc0_ref:    (2*BATCH, HID) f32, rows 0:B = h0, B:2B = c0
    # lstm_w_ref: (IN_DIM+HID, 4H) bf16, rows 0:IN_DIM = w_ih^T, rest = w_hh^T
    # lstm_b_ref: (1, 4H) f32, fused b_ih + b_hh
    # head_ref:   (HID+1, SEQ+OUT_DIM) f32, rows 0:HID weights, row HID bias;
    #             lanes 0:SEQ = attn head, SEQ: = out head
    # out_ref:    (BATCH, SEQ+OUT_DIM) f32, lanes 0:SEQ attn weights, SEQ: score
    w_ih = lstm_w_ref[0:IN_DIM, :]                        # (IN, 4H) bf16
    w_hh = lstm_w_ref[IN_DIM:IN_DIM + HID, :]             # (H, 4H) bf16
    b = lstm_b_ref[...]                                   # (1, 4H) f32

    # One MXU matmul covering the input projection of every time step.
    x_proj = jnp.dot(x_ref[...], w_ih,
                     preferred_element_type=jnp.float32) + b   # (S*B, 4H) f32

    h = hc0_ref[0:BATCH, :]                                # (B, H) f32
    c = hc0_ref[BATCH:2 * BATCH, :]                        # (B, H) f32

    enc = []
    # SEQ=8 -> static unroll of the inherently sequential LSTM recurrence.
    for t in range(SEQ):
        gates = x_proj[t * BATCH:(t + 1) * BATCH, :] + jnp.dot(
            h.astype(jnp.bfloat16), w_hh,
            preferred_element_type=jnp.float32)            # (B, 4H) f32
        # sigmoid in tanh form, computed full-width (one EUP push for i/f/o).
        sig = 0.5 * (jnp.tanh(0.5 * gates) + 1.0)
        i = sig[:, 0 * HID:1 * HID]
        f = sig[:, 1 * HID:2 * HID]
        g = jnp.tanh(gates[:, 2 * HID:3 * HID])
        o = sig[:, 3 * HID:4 * HID]
        c = f * c + i * g
        h = o * jnp.tanh(c)
        enc.append(h)

    head_w = head_ref[0:HID, :]                            # (H, S+OUT)
    head_b = head_ref[HID:HID + 1, :]                      # (1, S+OUT)
    attn_w = head_w[:, 0:SEQ]
    out_w = head_w[:, SEQ:SEQ + OUT_DIM]
    attn_b = head_b[:, 0:SEQ]
    out_b = head_b[:, SEQ:SEQ + OUT_DIM]

    # attention weights from the final hidden state: softmax(attn(h), dim=1)
    logits = jnp.dot(h, attn_w,
                     preferred_element_type=jnp.float32) + attn_b   # (B, S)
    m = jnp.max(logits, axis=-1, keepdims=True)
    e = jnp.exp(logits - m)
    w = e * pl.reciprocal(jnp.sum(e, axis=-1, keepdims=True), approx=True)

    # attn_applied[b] = sum_t w[b, t] * encoder_outputs[t, b, :]  (pure VPU)
    applied = w[:, 0:1] * enc[0]
    for t in range(1, SEQ):
        applied = applied + w[:, t:t + 1] * enc[t]          # (B, H)

    score = jnp.dot(applied, out_w,
                    preferred_element_type=jnp.float32) + out_b     # (B, OUT)

    # Single merged store: lanes 0:SEQ = attention weights, SEQ: = score.
    out_ref[...] = jnp.concatenate([w, score], axis=-1)


def init_params(key):
    """Deterministic PyTorch-style init, packed/pre-transposed for the kernel."""
    def uniform(k, shape, bound):
        return jax.random.uniform(k, shape, jnp.float32, -bound, bound)

    keys = jax.random.split(key, 8)
    kb = 1.0 / math.sqrt(HID)
    # nn.LSTM(input_dim, hidden_size) parameters (torch layout).
    w_ih = uniform(keys[0], (4 * HID, IN_DIM), kb)
    w_hh = uniform(keys[1], (4 * HID, HID), kb)
    b_ih = uniform(keys[2], (4 * HID,), kb)
    b_hh = uniform(keys[3], (4 * HID,), kb)
    # nn.Linear(hidden_size, seq_length)
    attn_w = uniform(keys[4], (SEQ, HID), kb)
    attn_b = uniform(keys[5], (SEQ,), kb)
    # nn.Linear(hidden_size, output_dim)
    out_w = uniform(keys[6], (OUT_DIM, HID), kb)
    out_b = uniform(keys[7], (OUT_DIM,), kb)

    # Packed buffers.
    lstm_w = jnp.concatenate([w_ih.T, w_hh.T], axis=0).astype(jnp.bfloat16)
    lstm_b = (b_ih + b_hh).reshape(1, 4 * HID)                      # (1, 4H) f32
    head_w = jnp.concatenate([attn_w.T, out_w.T], axis=1)           # (H, S+OUT)
    head_b = jnp.concatenate([attn_b, out_b]).reshape(1, SEQ + OUT_DIM)
    head = jnp.concatenate([head_w, head_b], axis=0)                # (H+1, S+OUT)
    return lstm_w, lstm_b, head


@jax.jit
def attention_forward(input_seq, hidden_state, params):
    # input_seq: (SEQ, BATCH, IN_DIM); hidden_state: ((1,B,H), (1,B,H))
    lstm_w, lstm_b, head = params
    h0, c0 = hidden_state
    x2 = input_seq.reshape(SEQ * BATCH, IN_DIM).astype(jnp.bfloat16)
    hc0 = jnp.concatenate([h0.reshape(BATCH, HID),
                           c0.reshape(BATCH, HID)], axis=0)          # (2B, H)

    packed = pl.pallas_call(
        lstm_attention_kernel,
        out_shape=jax.ShapeDtypeStruct((BATCH, SEQ + OUT_DIM), jnp.float32),
        in_specs=[pl.BlockSpec(memory_space=pltpu.MemorySpace.VMEM)] * 5,
        out_specs=pl.BlockSpec(memory_space=pltpu.MemorySpace.VMEM),
    )(x2, hc0, lstm_w, lstm_b, head)

    attn_weights = packed[:, 0:SEQ]
    score_seq = packed[:, SEQ:SEQ + OUT_DIM]
    return score_seq, attn_weights


if __name__ == "__main__":
    key = jax.random.PRNGKey(0)
    k_x, k_p = jax.random.split(key)
    x = jax.random.normal(k_x, (SEQ, BATCH, IN_DIM), jnp.float32)
    # init_hidden-equivalent
    hidden = (jnp.zeros((1, BATCH, HID), jnp.float32),
              jnp.zeros((1, BATCH, HID), jnp.float32))
    params = init_params(k_p)

    score_seq, attn_weights = attention_forward(x, hidden, params)
    jax.block_until_ready(score_seq)
    jax.block_until_ready(attn_weights)
    assert score_seq.shape == (BATCH, OUT_DIM)
    assert attn_weights.shape == (BATCH, SEQ)
    print("KERNEL_OK")
</pallas_src>

<mosaic_0001>
module attributes {stable_mosaic.version = 11 : i64} {
  func.func @lstm_attention_kernel(%arg0: memref<16x16xbf16, #tpu.memory_space<vmem>>, %arg1: memref<4x32xf32, #tpu.memory_space<vmem>>, %arg2: memref<48x128xbf16, #tpu.memory_space<vmem>>, %arg3: memref<1x128xf32, #tpu.memory_space<vmem>>, %arg4: memref<33x16xf32, #tpu.memory_space<vmem>>, %arg5: memref<2x16xf32, #tpu.memory_space<vmem>>) attributes {dimension_semantics = [], scalar_prefetch = 0 : i64, scratch_operands = 0 : i64, tpu.core_type = #tpu.core_type<tc>} {
    %c0 = arith.constant 0 : index
    %c0_0 = arith.constant 0 : index
    %0 = vector.load %arg2[%c0, %c0_0] : memref<48x128xbf16, #tpu.memory_space<vmem>>, vector<16x128xbf16>
    %c16 = arith.constant 16 : index
    %c0_1 = arith.constant 0 : index
    %1 = vector.load %arg2[%c16, %c0_1] : memref<48x128xbf16, #tpu.memory_space<vmem>>, vector<32x128xbf16>
    %c0_2 = arith.constant 0 : index
    %c0_3 = arith.constant 0 : index
    %2 = vector.load %arg3[%c0_2, %c0_3] : memref<1x128xf32, #tpu.memory_space<vmem>>, vector<1x128xf32>
    %c0_4 = arith.constant 0 : index
    %c0_5 = arith.constant 0 : index
    %3 = vector.load %arg0[%c0_4, %c0_5] : memref<16x16xbf16, #tpu.memory_space<vmem>>, vector<16x16xbf16>
    %cst = arith.constant dense<0.000000e+00> : vector<16x128xf32>
    %4 = tpu.matmul %3, %0, %cst {dimension_numbers = #tpu.dot_dimension_numbers<[1], [0], [0], [1], [0, 0, 1, 1], [], []>} : vector<16x16xbf16>, vector<16x128xbf16>, vector<16x128xf32> -> vector<16x128xf32>
    %5 = vector.broadcast %2 : vector<1x128xf32> to vector<16x128xf32>
    %6 = arith.addf %4, %5 : vector<16x128xf32>
    %c0_6 = arith.constant 0 : index
    %c0_7 = arith.constant 0 : index
    %7 = vector.load %arg1[%c0_6, %c0_7] : memref<4x32xf32, #tpu.memory_space<vmem>>, vector<2x32xf32>
    %c2 = arith.constant 2 : index
    %c0_8 = arith.constant 0 : index
    %8 = vector.load %arg1[%c2, %c0_8] : memref<4x32xf32, #tpu.memory_space<vmem>>, vector<2x32xf32>
    %9 = vector.extract_strided_slice %6 {offsets = [0, 0], sizes = [2, 128], strides = [1, 1]} : vector<16x128xf32> to vector<2x128xf32>
    %10 = arith.truncf %7 : vector<2x32xf32> to vector<2x32xbf16>
    %cst_9 = arith.constant dense<0.000000e+00> : vector<2x128xf32>
    %11 = tpu.matmul %10, %1, %cst_9 {dimension_numbers = #tpu.dot_dimension_numbers<[1], [0], [0], [1], [0, 0, 1, 1], [], []>} : vector<2x32xbf16>, vector<32x128xbf16>, vector<2x128xf32> -> vector<2x128xf32>
    %12 = arith.addf %9, %11 : vector<2x128xf32>
    %cst_10 = arith.constant 5.000000e-01 : f32
    %13 = vector.broadcast %cst_10 : f32 to vector<2x128xf32>
    %14 = arith.mulf %13, %12 : vector<2x128xf32>
    %15 = math.tanh %14 : vector<2x128xf32>
    %cst_11 = arith.constant 1.000000e+00 : f32
    %16 = vector.broadcast %cst_11 : f32 to vector<2x128xf32>
    %17 = arith.addf %15, %16 : vector<2x128xf32>
    %cst_12 = arith.constant 5.000000e-01 : f32
    %18 = vector.broadcast %cst_12 : f32 to vector<2x128xf32>
    %19 = arith.mulf %18, %17 : vector<2x128xf32>
    %20 = vector.extract_strided_slice %19 {offsets = [0, 0], sizes = [2, 32], strides = [1, 1]} : vector<2x128xf32> to vector<2x32xf32>
    %21 = vector.extract_strided_slice %19 {offsets = [0, 32], sizes = [2, 32], strides = [1, 1]} : vector<2x128xf32> to vector<2x32xf32>
    %22 = vector.extract_strided_slice %12 {offsets = [0, 64], sizes = [2, 32], strides = [1, 1]} : vector<2x128xf32> to vector<2x32xf32>
    %23 = math.tanh %22 : vector<2x32xf32>
    %24 = vector.extract_strided_slice %19 {offsets = [0, 96], sizes = [2, 32], strides = [1, 1]} : vector<2x128xf32> to vector<2x32xf32>
    %25 = arith.mulf %21, %8 : vector<2x32xf32>
    %26 = arith.mulf %20, %23 : vector<2x32xf32>
    %27 = arith.addf %25, %26 : vector<2x32xf32>
    %28 = math.tanh %27 : vector<2x32xf32>
    %29 = arith.mulf %24, %28 : vector<2x32xf32>
    %30 = vector.extract_strided_slice %6 {offsets = [2, 0], sizes = [2, 128], strides = [1, 1]} : vector<16x128xf32> to vector<2x128xf32>
    %31 = arith.truncf %29 : vector<2x32xf32> to vector<2x32xbf16>
    %cst_13 = arith.constant dense<0.000000e+00> : vector<2x128xf32>
    %32 = tpu.matmul %31, %1, %cst_13 {dimension_numbers = #tpu.dot_dimension_numbers<[1], [0], [0], [1], [0, 0, 1, 1], [], []>} : vector<2x32xbf16>, vector<32x128xbf16>, vector<2x128xf32> -> vector<2x128xf32>
    %33 = arith.addf %30, %32 : vector<2x128xf32>
    %cst_14 = arith.constant 5.000000e-01 : f32
    %34 = vector.broadcast %cst_14 : f32 to vector<2x128xf32>
    %35 = arith.mulf %34, %33 : vector<2x128xf32>
    %36 = math.tanh %35 : vector<2x128xf32>
    %cst_15 = arith.constant 1.000000e+00 : f32
    %37 = vector.broadcast %cst_15 : f32 to vector<2x128xf32>
    %38 = arith.addf %36, %37 : vector<2x128xf32>
    %cst_16 = arith.constant 5.000000e-01 : f32
    %39 = vector.broadcast %cst_16 : f32 to vector<2x128xf32>
    %40 = arith.mulf %39, %38 : vector<2x128xf32>
    %41 = vector.extract_strided_slice %40 {offsets = [0, 0], sizes = [2, 32], strides = [1, 1]} : vector<2x128xf32> to vector<2x32xf32>
    %42 = vector.extract_strided_slice %40 {offsets = [0, 32], sizes = [2, 32], strides = [1, 1]} : vector<2x128xf32> to vector<2x32xf32>
    %43 = vector.extract_strided_slice %33 {offsets = [0, 64], sizes = [2, 32], strides = [1, 1]} : vector<2x128xf32> to vector<2x32xf32>
    %44 = math.tanh %43 : vector<2x32xf32>
    %45 = vector.extract_strided_slice %40 {offsets = [0, 96], sizes = [2, 32], strides = [1, 1]} : vector<2x128xf32> to vector<2x32xf32>
    %46 = arith.mulf %42, %27 : vector<2x32xf32>
    %47 = arith.mulf %41, %44 : vector<2x32xf32>
    %48 = arith.addf %46, %47 : vector<2x32xf32>
    %49 = math.tanh %48 : vector<2x32xf32>
    %50 = arith.mulf %45, %49 : vector<2x32xf32>
    %51 = vector.extract_strided_slice %6 {offsets = [4, 0], sizes = [2, 128], strides = [1, 1]} : vector<16x128xf32> to vector<2x128xf32>
    %52 = arith.truncf %50 : vector<2x32xf32> to vector<2x32xbf16>
    %cst_17 = arith.constant dense<0.000000e+00> : vector<2x128xf32>
    %53 = tpu.matmul %52, %1, %cst_17 {dimension_numbers = #tpu.dot_dimension_numbers<[1], [0], [0], [1], [0, 0, 1, 1], [], []>} : vector<2x32xbf16>, vector<32x128xbf16>, vector<2x128xf32> -> vector<2x128xf32>
    %54 = arith.addf %51, %53 : vector<2x128xf32>
    %cst_18 = arith.constant 5.000000e-01 : f32
    %55 = vector.broadcast %cst_18 : f32 to vector<2x128xf32>
    %56 = arith.mulf %55, %54 : vector<2x128xf32>
    %57 = math.tanh %56 : vector<2x128xf32>
    %cst_19 = arith.constant 1.000000e+00 : f32
    %58 = vector.broadcast %cst_19 : f32 to vector<2x128xf32>
    %59 = arith.addf %57, %58 : vector<2x128xf32>
    %cst_20 = arith.constant 5.000000e-01 : f32
    %60 = vector.broadcast %cst_20 : f32 to vector<2x128xf32>
    %61 = arith.mulf %60, %59 : vector<2x128xf32>
    %62 = vector.extract_strided_slice %61 {offsets = [0, 0], sizes = [2, 32], strides = [1, 1]} : vector<2x128xf32> to vector<2x32xf32>
    %63 = vector.extract_strided_slice %61 {offsets = [0, 32], sizes = [2, 32], strides = [1, 1]} : vector<2x128xf32> to vector<2x32xf32>
    %64 = vector.extract_strided_slice %54 {offsets = [0, 64], sizes = [2, 32], strides = [1, 1]} : vector<2x128xf32> to vector<2x32xf32>
    %65 = math.tanh %64 : vector<2x32xf32>
    %66 = vector.extract_strided_slice %61 {offsets = [0, 96], sizes = [2, 32], strides = [1, 1]} : vector<2x128xf32> to vector<2x32xf32>
    %67 = arith.mulf %63, %48 : vector<2x32xf32>
    %68 = arith.mulf %62, %65 : vector<2x32xf32>
    %69 = arith.addf %67, %68 : vector<2x32xf32>
    %70 = math.tanh %69 : vector<2x32xf32>
    %71 = arith.mulf %66, %70 : vector<2x32xf32>
    %72 = vector.extract_strided_slice %6 {offsets = [6, 0], sizes = [2, 128], strides = [1, 1]} : vector<16x128xf32> to vector<2x128xf32>
    %73 = arith.truncf %71 : vector<2x32xf32> to vector<2x32xbf16>
    %cst_21 = arith.constant dense<0.000000e+00> : vector<2x128xf32>
    %74 = tpu.matmul %73, %1, %cst_21 {dimension_numbers = #tpu.dot_dimension_numbers<[1], [0], [0], [1], [0, 0, 1, 1], [], []>} : vector<2x32xbf16>, vector<32x128xbf16>, vector<2x128xf32> -> vector<2x128xf32>
    %75 = arith.addf %72, %74 : vector<2x128xf32>
    %cst_22 = arith.constant 5.000000e-01 : f32
    %76 = vector.broadcast %cst_22 : f32 to vector<2x128xf32>
    %77 = arith.mulf %76, %75 : vector<2x128xf32>
    %78 = math.tanh %77 : vector<2x128xf32>
    %cst_23 = arith.constant 1.000000e+00 : f32
    %79 = vector.broadcast %cst_23 : f32 to vector<2x128xf32>
    %80 = arith.addf %78, %79 : vector<2x128xf32>
    %cst_24 = arith.constant 5.000000e-01 : f32
    %81 = vector.broadcast %cst_24 : f32 to vector<2x128xf32>
    %82 = arith.mulf %81, %80 : vector<2x128xf32>
    %83 = vector.extract_strided_slice %82 {offsets = [0, 0], sizes = [2, 32], strides = [1, 1]} : vector<2x128xf32> to vector<2x32xf32>
    %84 = vector.extract_strided_slice %82 {offsets = [0, 32], sizes = [2, 32], strides = [1, 1]} : vector<2x128xf32> to vector<2x32xf32>
    %85 = vector.extract_strided_slice %75 {offsets = [0, 64], sizes = [2, 32], strides = [1, 1]} : vector<2x128xf32> to vector<2x32xf32>
    %86 = math.tanh %85 : vector<2x32xf32>
    %87 = vector.extract_strided_slice %82 {offsets = [0, 96], sizes = [2, 32], strides = [1, 1]} : vector<2x128xf32> to vector<2x32xf32>
    %88 = arith.mulf %84, %69 : vector<2x32xf32>
    %89 = arith.mulf %83, %86 : vector<2x32xf32>
    %90 = arith.addf %88, %89 : vector<2x32xf32>
    %91 = math.tanh %90 : vector<2x32xf32>
    %92 = arith.mulf %87, %91 : vector<2x32xf32>
    %93 = vector.extract_strided_slice %6 {offsets = [8, 0], sizes = [2, 128], strides = [1, 1]} : vector<16x128xf32> to vector<2x128xf32>
    %94 = arith.truncf %92 : vector<2x32xf32> to vector<2x32xbf16>
    %cst_25 = arith.constant dense<0.000000e+00> : vector<2x128xf32>
    %95 = tpu.matmul %94, %1, %cst_25 {dimension_numbers = #tpu.dot_dimension_numbers<[1], [0], [0], [1], [0, 0, 1, 1], [], []>} : vector<2x32xbf16>, vector<32x128xbf16>, vector<2x128xf32> -> vector<2x128xf32>
    %96 = arith.addf %93, %95 : vector<2x128xf32>
    %cst_26 = arith.constant 5.000000e-01 : f32
    %97 = vector.broadcast %cst_26 : f32 to vector<2x128xf32>
    %98 = arith.mulf %97, %96 : vector<2x128xf32>
    %99 = math.tanh %98 : vector<2x128xf32>
    %cst_27 = arith.constant 1.000000e+00 : f32
    %100 = vector.broadcast %cst_27 : f32 to vector<2x128xf32>
    %101 = arith.addf %99, %100 : vector<2x128xf32>
    %cst_28 = arith.constant 5.000000e-01 : f32
    %102 = vector.broadcast %cst_28 : f32 to vector<2x128xf32>
    %103 = arith.mulf %102, %101 : vector<2x128xf32>
    %104 = vector.extract_strided_slice %103 {offsets = [0, 0], sizes = [2, 32], strides = [1, 1]} : vector<2x128xf32> to vector<2x32xf32>
    %105 = vector.extract_strided_slice %103 {offsets = [0, 32], sizes = [2, 32], strides = [1, 1]} : vector<2x128xf32> to vector<2x32xf32>
    %106 = vector.extract_strided_slice %96 {offsets = [0, 64], sizes = [2, 32], strides = [1, 1]} : vector<2x128xf32> to vector<2x32xf32>
    %107 = math.tanh %106 : vector<2x32xf32>
    %108 = vector.extract_strided_slice %103 {offsets = [0, 96], sizes = [2, 32], strides = [1, 1]} : vector<2x128xf32> to vector<2x32xf32>
    %109 = arith.mulf %105, %90 : vector<2x32xf32>
    %110 = arith.mulf %104, %107 : vector<2x32xf32>
    %111 = arith.addf %109, %110 : vector<2x32xf32>
    %112 = math.tanh %111 : vector<2x32xf32>
    %113 = arith.mulf %108, %112 : vector<2x32xf32>
    %114 = vector.extract_strided_slice %6 {offsets = [10, 0], sizes = [2, 128], strides = [1, 1]} : vector<16x128xf32> to vector<2x128xf32>
    %115 = arith.truncf %113 : vector<2x32xf32> to vector<2x32xbf16>
    %cst_29 = arith.constant dense<0.000000e+00> : vector<2x128xf32>
    %116 = tpu.matmul %115, %1, %cst_29 {dimension_numbers = #tpu.dot_dimension_numbers<[1], [0], [0], [1], [0, 0, 1, 1], [], []>} : vector<2x32xbf16>, vector<32x128xbf16>, vector<2x128xf32> -> vector<2x128xf32>
    %117 = arith.addf %114, %116 : vector<2x128xf32>
    %cst_30 = arith.constant 5.000000e-01 : f32
    %118 = vector.broadcast %cst_30 : f32 to vector<2x128xf32>
    %119 = arith.mulf %118, %117 : vector<2x128xf32>
    %120 = math.tanh %119 : vector<2x128xf32>
    %cst_31 = arith.constant 1.000000e+00 : f32
    %121 = vector.broadcast %cst_31 : f32 to vector<2x128xf32>
    %122 = arith.addf %120, %121 : vector<2x128xf32>
    %cst_32 = arith.constant 5.000000e-01 : f32
    %123 = vector.broadcast %cst_32 : f32 to vector<2x128xf32>
    %124 = arith.mulf %123, %122 : vector<2x128xf32>
    %125 = vector.extract_strided_slice %124 {offsets = [0, 0], sizes = [2, 32], strides = [1, 1]} : vector<2x128xf32> to vector<2x32xf32>
    %126 = vector.extract_strided_slice %124 {offsets = [0, 32], sizes = [2, 32], strides = [1, 1]} : vector<2x128xf32> to vector<2x32xf32>
    %127 = vector.extract_strided_slice %117 {offsets = [0, 64], sizes = [2, 32], strides = [1, 1]} : vector<2x128xf32> to vector<2x32xf32>
    %128 = math.tanh %127 : vector<2x32xf32>
    %129 = vector.extract_strided_slice %124 {offsets = [0, 96], sizes = [2, 32], strides = [1, 1]} : vector<2x128xf32> to vector<2x32xf32>
    %130 = arith.mulf %126, %111 : vector<2x32xf32>
    %131 = arith.mulf %125, %128 : vector<2x32xf32>
    %132 = arith.addf %130, %131 : vector<2x32xf32>
    %133 = math.tanh %132 : vector<2x32xf32>
    %134 = arith.mulf %129, %133 : vector<2x32xf32>
    %135 = vector.extract_strided_slice %6 {offsets = [12, 0], sizes = [2, 128], strides = [1, 1]} : vector<16x128xf32> to vector<2x128xf32>
    %136 = arith.truncf %134 : vector<2x32xf32> to vector<2x32xbf16>
    %cst_33 = arith.constant dense<0.000000e+00> : vector<2x128xf32>
    %137 = tpu.matmul %136, %1, %cst_33 {dimension_numbers = #tpu.dot_dimension_numbers<[1], [0], [0], [1], [0, 0, 1, 1], [], []>} : vector<2x32xbf16>, vector<32x128xbf16>, vector<2x128xf32> -> vector<2x128xf32>
    %138 = arith.addf %135, %137 : vector<2x128xf32>
    %cst_34 = arith.constant 5.000000e-01 : f32
    %139 = vector.broadcast %cst_34 : f32 to vector<2x128xf32>
    %140 = arith.mulf %139, %138 : vector<2x128xf32>
    %141 = math.tanh %140 : vector<2x128xf32>
    %cst_35 = arith.constant 1.000000e+00 : f32
    %142 = vector.broadcast %cst_35 : f32 to vector<2x128xf32>
    %143 = arith.addf %141, %142 : vector<2x128xf32>
    %cst_36 = arith.constant 5.000000e-01 : f32
    %144 = vector.broadcast %cst_36 : f32 to vector<2x128xf32>
    %145 = arith.mulf %144, %143 : vector<2x128xf32>
    %146 = vector.extract_strided_slice %145 {offsets = [0, 0], sizes = [2, 32], strides = [1, 1]} : vector<2x128xf32> to vector<2x32xf32>
    %147 = vector.extract_strided_slice %145 {offsets = [0, 32], sizes = [2, 32], strides = [1, 1]} : vector<2x128xf32> to vector<2x32xf32>
    %148 = vector.extract_strided_slice %138 {offsets = [0, 64], sizes = [2, 32], strides = [1, 1]} : vector<2x128xf32> to vector<2x32xf32>
    %149 = math.tanh %148 : vector<2x32xf32>
    %150 = vector.extract_strided_slice %145 {offsets = [0, 96], sizes = [2, 32], strides = [1, 1]} : vector<2x128xf32> to vector<2x32xf32>
    %151 = arith.mulf %147, %132 : vector<2x32xf32>
    %152 = arith.mulf %146, %149 : vector<2x32xf32>
    %153 = arith.addf %151, %152 : vector<2x32xf32>
    %154 = math.tanh %153 : vector<2x32xf32>
    %155 = arith.mulf %150, %154 : vector<2x32xf32>
    %156 = vector.extract_strided_slice %6 {offsets = [14, 0], sizes = [2, 128], strides = [1, 1]} : vector<16x128xf32> to vector<2x128xf32>
    %157 = arith.truncf %155 : vector<2x32xf32> to vector<2x32xbf16>
    %cst_37 = arith.constant dense<0.000000e+00> : vector<2x128xf32>
    %158 = tpu.matmul %157, %1, %cst_37 {dimension_numbers = #tpu.dot_dimension_numbers<[1], [0], [0], [1], [0, 0, 1, 1], [], []>} : vector<2x32xbf16>, vector<32x128xbf16>, vector<2x128xf32> -> vector<2x128xf32>
    %159 = arith.addf %156, %158 : vector<2x128xf32>
    %cst_38 = arith.constant 5.000000e-01 : f32
    %160 = vector.broadcast %cst_38 : f32 to vector<2x128xf32>
    %161 = arith.mulf %160, %159 : vector<2x128xf32>
    %162 = math.tanh %161 : vector<2x128xf32>
    %cst_39 = arith.constant 1.000000e+00 : f32
    %163 = vector.broadcast %cst_39 : f32 to vector<2x128xf32>
    %164 = arith.addf %162, %163 : vector<2x128xf32>
    %cst_40 = arith.constant 5.000000e-01 : f32
    %165 = vector.broadcast %cst_40 : f32 to vector<2x128xf32>
    %166 = arith.mulf %165, %164 : vector<2x128xf32>
    %167 = vector.extract_strided_slice %166 {offsets = [0, 0], sizes = [2, 32], strides = [1, 1]} : vector<2x128xf32> to vector<2x32xf32>
    %168 = vector.extract_strided_slice %166 {offsets = [0, 32], sizes = [2, 32], strides = [1, 1]} : vector<2x128xf32> to vector<2x32xf32>
    %169 = vector.extract_strided_slice %159 {offsets = [0, 64], sizes = [2, 32], strides = [1, 1]} : vector<2x128xf32> to vector<2x32xf32>
    %170 = math.tanh %169 : vector<2x32xf32>
    %171 = vector.extract_strided_slice %166 {offsets = [0, 96], sizes = [2, 32], strides = [1, 1]} : vector<2x128xf32> to vector<2x32xf32>
    %172 = arith.mulf %168, %153 : vector<2x32xf32>
    %173 = arith.mulf %167, %170 : vector<2x32xf32>
    %174 = arith.addf %172, %173 : vector<2x32xf32>
    %175 = math.tanh %174 : vector<2x32xf32>
    %176 = arith.mulf %171, %175 : vector<2x32xf32>
    %c0_41 = arith.constant 0 : index
    %c0_42 = arith.constant 0 : index
    %177 = vector.load %arg4[%c0_41, %c0_42] : memref<33x16xf32, #tpu.memory_space<vmem>>, vector<32x16xf32>
    %c32 = arith.constant 32 : index
    %c0_43 = arith.constant 0 : index
    %178 = vector.load %arg4[%c32, %c0_43] : memref<33x16xf32, #tpu.memory_space<vmem>>, vector<1x16xf32>
    %179 = vector.extract_strided_slice %177 {offsets = [0, 0], sizes = [32, 8], strides = [1, 1]} : vector<32x16xf32> to vector<32x8xf32>
    %180 = vector.extract_strided_slice %177 {offsets = [0, 8], sizes = [32, 8], strides = [1, 1]} : vector<32x16xf32> to vector<32x8xf32>
    %181 = vector.extract_strided_slice %178 {offsets = [0, 0], sizes = [1, 8], strides = [1, 1]} : vector<1x16xf32> to vector<1x8xf32>
    %182 = vector.extract_strided_slice %178 {offsets = [0, 8], sizes = [1, 8], strides = [1, 1]} : vector<1x16xf32> to vector<1x8xf32>
    %cst_44 = arith.constant dense<0.000000e+00> : vector<2x8xf32>
    %183 = tpu.matmul %176, %179, %cst_44 {dimension_numbers = #tpu.dot_dimension_numbers<[1], [0], [0], [1], [0, 0, 1, 1], [], []>} : vector<2x32xf32>, vector<32x8xf32>, vector<2x8xf32> -> vector<2x8xf32>
    %184 = vector.broadcast %181 : vector<1x8xf32> to vector<2x8xf32>
    %185 = arith.addf %183, %184 : vector<2x8xf32>
    %cst_45 = arith.constant dense<0xFF800000> : vector<2xf32>
    %186 = vector.multi_reduction <maximumf>, %185, %cst_45 [1] : vector<2x8xf32> to vector<2xf32>
    %187 = vector.shape_cast %186 : vector<2xf32> to vector<2x1xf32>
    %188 = vector.broadcast %187 : vector<2x1xf32> to vector<2x8xf32>
    %189 = arith.subf %185, %188 : vector<2x8xf32>
    %190 = math.exp %189 : vector<2x8xf32>
    %cst_46 = arith.constant dense<0.000000e+00> : vector<2xf32>
    %191 = vector.multi_reduction <add>, %190, %cst_46 [1] : vector<2x8xf32> to vector<2xf32>
    %192 = vector.shape_cast %191 : vector<2xf32> to vector<2x1xf32>
    %193 = tpu.reciprocal %192 {approx = true} : vector<2x1xf32> -> vector<2x1xf32>
    %194 = vector.broadcast %193 : vector<2x1xf32> to vector<2x8xf32>
    %195 = arith.mulf %190, %194 : vector<2x8xf32>
    %196 = vector.extract_strided_slice %195 {offsets = [0, 0], sizes = [2, 1], strides = [1, 1]} : vector<2x8xf32> to vector<2x1xf32>
    %197 = vector.broadcast %196 : vector<2x1xf32> to vector<2x32xf32>
    %198 = arith.mulf %197, %29 : vector<2x32xf32>
    %199 = vector.extract_strided_slice %195 {offsets = [0, 1], sizes = [2, 1], strides = [1, 1]} : vector<2x8xf32> to vector<2x1xf32>
    %200 = vector.broadcast %199 : vector<2x1xf32> to vector<2x32xf32>
    %201 = arith.mulf %200, %50 : vector<2x32xf32>
    %202 = arith.addf %198, %201 : vector<2x32xf32>
    %203 = vector.extract_strided_slice %195 {offsets = [0, 2], sizes = [2, 1], strides = [1, 1]} : vector<2x8xf32> to vector<2x1xf32>
    %204 = vector.broadcast %203 : vector<2x1xf32> to vector<2x32xf32>
    %205 = arith.mulf %204, %71 : vector<2x32xf32>
    %206 = arith.addf %202, %205 : vector<2x32xf32>
    %207 = vector.extract_strided_slice %195 {offsets = [0, 3], sizes = [2, 1], strides = [1, 1]} : vector<2x8xf32> to vector<2x1xf32>
    %208 = vector.broadcast %207 : vector<2x1xf32> to vector<2x32xf32>
    %209 = arith.mulf %208, %92 : vector<2x32xf32>
    %210 = arith.addf %206, %209 : vector<2x32xf32>
    %211 = vector.extract_strided_slice %195 {offsets = [0, 4], sizes = [2, 1], strides = [1, 1]} : vector<2x8xf32> to vector<2x1xf32>
    %212 = vector.broadcast %211 : vector<2x1xf32> to vector<2x32xf32>
    %213 = arith.mulf %212, %113 : vector<2x32xf32>
    %214 = arith.addf %210, %213 : vector<2x32xf32>
    %215 = vector.extract_strided_slice %195 {offsets = [0, 5], sizes = [2, 1], strides = [1, 1]} : vector<2x8xf32> to vector<2x1xf32>
    %216 = vector.broadcast %215 : vector<2x1xf32> to vector<2x32xf32>
    %217 = arith.mulf %216, %134 : vector<2x32xf32>
    %218 = arith.addf %214, %217 : vector<2x32xf32>
    %219 = vector.extract_strided_slice %195 {offsets = [0, 6], sizes = [2, 1], strides = [1, 1]} : vector<2x8xf32> to vector<2x1xf32>
    %220 = vector.broadcast %219 : vector<2x1xf32> to vector<2x32xf32>
    %221 = arith.mulf %220, %155 : vector<2x32xf32>
    %222 = arith.addf %218, %221 : vector<2x32xf32>
    %223 = vector.extract_strided_slice %195 {offsets = [0, 7], sizes = [2, 1], strides = [1, 1]} : vector<2x8xf32> to vector<2x1xf32>
    %224 = vector.broadcast %223 : vector<2x1xf32> to vector<2x32xf32>
    %225 = arith.mulf %224, %176 : vector<2x32xf32>
    %226 = arith.addf %222, %225 : vector<2x32xf32>
    %cst_47 = arith.constant dense<0.000000e+00> : vector<2x8xf32>
    %227 = tpu.matmul %226, %180, %cst_47 {dimension_numbers = #tpu.dot_dimension_numbers<[1], [0], [0], [1], [0, 0, 1, 1], [], []>} : vector<2x32xf32>, vector<32x8xf32>, vector<2x8xf32> -> vector<2x8xf32>
    %228 = vector.broadcast %182 : vector<1x8xf32> to vector<2x8xf32>
    %229 = arith.addf %227, %228 : vector<2x8xf32>
    %230 = tpu.concatenate %195, %229 in 1 : vector<2x8xf32>, vector<2x8xf32> -> vector<2x16xf32>
    %c0_48 = arith.constant 0 : index
    %c0_49 = arith.constant 0 : index
    %231 = vector.load %arg5[%c0_48, %c0_49] : memref<2x16xf32, #tpu.memory_space<vmem>>, vector<2x16xf32>
    tpu.vector_store %arg5[%c0_48, %c0_49], %230 {strides = array<i32>} : memref<2x16xf32, #tpu.memory_space<vmem>>, vector<2x16xf32>,
    return
  }
}

</mosaic_0001>

<llo_original>
// kernel: attention_forward.1
$region0: #{attention_forward.1}
  #allocation0 [shape = 'u32[]', space=smem, size = 0x4, offset = 0x4, fixed_abs, tag = 'smem constant byte address 0x4 - core index']
  #allocation1 [shape = 'u32[144,128]{1,0:T(1,128)}', space=vmem, size = 0x12000, scoped, tag = 'internal scratch']
  %s0 = inlined_call_operand.vmem [shape: bf16[16,16], index: 0, kind: input, shape index: {}]
  %s1 = inlined_call_operand.vmem [shape: f32[4,32], index: 1, kind: input, shape index: {}]
  %s2 = inlined_call_operand.vmem [shape: bf16[48,128], index: 2, kind: input, shape index: {}]
  %s3 = inlined_call_operand.vmem [shape: f32[1,128], index: 3, kind: input, shape index: {}]
  %s4 = inlined_call_operand.vmem [shape: f32[33,16], index: 4, kind: input, shape index: {}]
  %s5 = inlined_call_operand.vmem [shape: f32[2,16], index: 5, kind: output, shape index: {}]
  %s6 = sld [smem:[#allocation0]]
  $region30: #{attention_forward.1} parent=0
    _
  %s8 = ssub.s32 1, %s6
  %s9 = scalar_select 0, %s8, %s6
  // Predicated region
  $region2: #{attention_forward.1} parent=0 // pred_check
    _
  $region3: #{attention_forward.1} parent=0 // pred_check_branch
    %11 = sbr.rel (0) target = $region5
  $region4: #{attention_forward.1} parent=0 // pred_region
    _
  $region5: #{attention_forward.1} parent=0 // pred_fallthru
    _
  // Predicated region
  $region6: #{attention_forward.1} parent=0 // pred_check
    _
  $region7: #{attention_forward.1} parent=0 // pred_check_branch
    %13 = sbr.rel (0) target = $region9
  $region8: #{attention_forward.1} parent=0 // pred_region
    _
  $region9: #{attention_forward.1} parent=0 // pred_fallthru
    _
  // Predicated region
  $region10: #{attention_forward.1} parent=0 // pred_check
    _
  $region11: #{attention_forward.1} parent=0 // pred_check_branch
    %15 = sbr.rel (0) target = $region13
  $region12: #{attention_forward.1} parent=0 // pred_region
    _
  $region13: #{attention_forward.1} parent=0 // pred_fallthru
    _
  // Predicated region
  $region14: #{attention_forward.1} parent=0 // pred_check
    _
  $region15: #{attention_forward.1} parent=0 // pred_check_branch
    %17 = sbr.rel (0) target = $region17
  $region16: #{attention_forward.1} parent=0 // pred_region
    _
  $region17: #{attention_forward.1} parent=0 // pred_fallthru
    _
  // Predicated region
  $region18: #{attention_forward.1} parent=0 // pred_check
    _
  $region19: #{attention_forward.1} parent=0 // pred_check_branch
    %19 = sbr.rel (0) target = $region21
  $region20: #{attention_forward.1} parent=0 // pred_region
    _
  $region21: #{attention_forward.1} parent=0 // pred_fallthru
    _
  %v21 = vld [vmem:[%s2] sm:$0xf]
  %v22 = vld [vmem:[%s2 + $0x4] sm:$0xf]
  %v23 = vld [vmem:[%s2 + $0x8] sm:$0xf]
  %v24 = vld [vmem:[%s2 + $0xc] sm:$0xf]
  %v25 = vld [vmem:[%s2 + $0x10] sm:$0xf]
  %v26 = vld [vmem:[%s2 + $0x14] sm:$0xf]
  %v27 = vld [vmem:[%s3] sm:$0x1]
  %v28 = vld [vmem:[%s0] sm:$0xf]
  %v29 = vld [vmem:[%s0 + $0x4] sm:$0xf]
  %v31 = vlaneseq
  %v32 = vshrl.u32 %v31, 7
  %v33 = vsub.s32 0, %v32
  %v34 = vrot.slane %v27, %v33
  %v38 = vunpack.c.l.b16 %v28
  %v39 = vunpack.c.l.b16 %v29
  %v40 = vpack.c.b16 %v39, %v38
  %v43 = vunpack.c.l.b16 %v21
  %v44 = vunpack.c.l.b16 %v22
  %v45 = vpack.c.b16 %v44, %v43
  %vm47 = vcmask 130048
  %v49 = vsel %vm47, %v40, 0
  %51 = vmatprep.subr.bf16.mxu0 0
  %52 = vmatpush1.bf16.msra.mxu0 %v45
  %53 = vmatprep.subr.bf16.mxu0 0
  %54 = vmatpush1.bf16.msra.mxu0 0
  %55 = vmatprep.subr.bf16.mxu0 0
  %56 = vmatpush1.bf16.msra.mxu0 0
  %57 = vmatprep.subr.bf16.mxu0 0
  %58 = vmatpush1.bf16.msra.mxu0 0
  %59 = vmatprep.subr.bf16.mxu0 0
  %60 = vmatpush1.bf16.msra.mxu0 0
  %61 = vmatprep.subr.bf16.mxu0 0
  %62 = vmatpush1.bf16.msra.mxu0 0
  %63 = vmatprep.subr.bf16.mxu0 0
  %64 = vmatpush1.bf16.msra.mxu0 0
  %65 = vmatprep.subr.bf16.mxu0 0
  %66 = vmatpush1.bf16.msra.mxu0 0
  %67 = vmatprep.subr.bf16.mxu0 0
  %68 = vmatpush1.bf16.msra.mxu0 0
  %69 = vmatprep.subr.bf16.mxu0 0
  %70 = vmatpush1.bf16.msra.mxu0 0
  %71 = vmatprep.subr.bf16.mxu0 0
  %72 = vmatpush1.bf16.msra.mxu0 0
  %73 = vmatprep.subr.bf16.mxu0 0
  %74 = vmatpush1.bf16.msra.mxu0 0
  %75 = vmatprep.subr.bf16.mxu0 0
  %76 = vmatpush1.bf16.msra.mxu0 0
  %77 = vmatprep.subr.bf16.mxu0 0
  %78 = vmatpush1.bf16.msra.mxu0 0
  %79 = vmatprep.subr.bf16.mxu0 0
  %80 = vmatpush1.bf16.msra.mxu0 0
  %81 = vmatprep.subr.bf16.mxu0 0
  %82 = vmatpush1.bf16.msra.mxu0 0
  %83 = vmatprep.mubr.bf16.mxu0 0
  %84 = vmatmul.mubr.bf16.gmra.mrb[0].mxu0 %v49
  %v85 = vpop.f32.mrb[0].mxu0
  %v86 = vadd.f32 %v34, %v85
  %v87 = vpop.f32.mrb[0].mxu0
  %v88 = vpop.f32.mrb[0].mxu0
  %v89 = vadd.f32 %v34, %v88
  %v90 = vpop.f32.mrb[0].mxu0
  %91 = vdwg.mxu0
  %v92 = vld [vmem:[%s1] sm:$0x3]
  %v93 = vld [vmem:[%s1 + $0x2] sm:$0x3]
  %v94 = vpack.c.bf16 %v92, %v92
  %v99 = vunpack.c.l.b16 %v23
  %v100 = vunpack.c.l.b16 %v24
  %v101 = vunpack.c.l.b16 %v25
  %v102 = vunpack.c.l.b16 %v26
  %v103 = vpack.c.b16 %v100, %v99
  %v104 = vpack.c.b16 %v102, %v101
  %vm107 = vcmask 261120
  %v109 = vsel %vm107, %v94, 0
  %111 = vmatprep.subr.bf16.mxu0 0
  %112 = vmatpush1.bf16.msra.mxu0 %v103
  %113 = vmatprep.subr.bf16.mxu0 0
  %114 = vmatpush1.bf16.msra.mxu0 %v104
  %115 = vmatprep.subr.bf16.mxu0 0
  %116 = vmatpush1.bf16.msra.mxu0 0
  %117 = vmatprep.subr.bf16.mxu0 0
  %118 = vmatpush1.bf16.msra.mxu0 0
  %119 = vmatprep.subr.bf16.mxu0 0
  %120 = vmatpush1.bf16.msra.mxu0 0
  %121 = vmatprep.subr.bf16.mxu0 0
  %122 = vmatpush1.bf16.msra.mxu0 0
  %123 = vmatprep.subr.bf16.mxu0 0
  %124 = vmatpush1.bf16.msra.mxu0 0
  %125 = vmatprep.subr.bf16.mxu0 0
  %126 = vmatpush1.bf16.msra.mxu0 0
  %127 = vmatprep.subr.bf16.mxu0 0
  %128 = vmatpush1.bf16.msra.mxu0 0
  %129 = vmatprep.subr.bf16.mxu0 0
  %130 = vmatpush1.bf16.msra.mxu0 0
  %131 = vmatprep.subr.bf16.mxu0 0
  %132 = vmatpush1.bf16.msra.mxu0 0
  %133 = vmatprep.subr.bf16.mxu0 0
  %134 = vmatpush1.bf16.msra.mxu0 0
  %135 = vmatprep.subr.bf16.mxu0 0
  %136 = vmatpush1.bf16.msra.mxu0 0
  %137 = vmatprep.subr.bf16.mxu0 0
  %138 = vmatpush1.bf16.msra.mxu0 0
  %139 = vmatprep.subr.bf16.mxu0 0
  %140 = vmatpush1.bf16.msra.mxu0 0
  %141 = vmatprep.subr.bf16.mxu0 0
  %142 = vmatpush1.bf16.msra.mxu0 0
  %143 = vmatprep.mubr.bf16.mxu0 0
  %144 = vmatmul.mubr.bf16.gmra.mrb[0].mxu0 %v109
  %v145 = vpop.f32.mrb[0].mxu0
  %v146 = vadd.f32 0.0, %v145
  %v147 = vpop.f32.mrb[0].mxu0
  %v148 = vpop.f32.mrb[0].mxu0
  %v149 = vpop.f32.mrb[0].mxu0
  %150 = vdwg.mxu0
  %v151 = vadd.f32 %v86, %v146
  %v152 = vmul.f32 %v151, 0.5
  %v153 = vtanh.pop %v152
  %v154 = vadd.f32 %v153, 1.0
  %v155 = vmul.f32 %v154, 0.5
  %v156 = vtanh.pop %v151
  %158 = vrot.lane.b32.xlu0 %v93, 32
  %v159 = vpop.permute.xlu0 %158
  %v161 = vmul.f32 %v155, %v159
  %163 = vrot.lane.b32.xlu0 %v156, 64
  %v164 = vpop.permute.xlu0 %163
  %v166 = vmul.f32 %v155, %v164
  %168 = vrot.lane.b32.xlu0 %v166, 32
  %v169 = vpop.permute.xlu0 %168
  %v171 = vadd.f32 %v161, %v169
  %v172 = vtanh.pop %v171
  %174 = vrot.lane.b32.xlu0 %v172, 64
  %v175 = vpop.permute.xlu0 %174
  %v177 = vmul.f32 %v155, %v175
  %v178 = vpack.c.bf16 %v177, %v177
  %180 = vrot.lane.b32.xlu0 %v178, 32
  %v181 = vpop.permute.xlu0 %180
  %v183 = vsel %vm107, %v181, 0
  %185 = vmatprep.subr.bf16.mxu0 0
  %186 = vmatpush1.bf16.msra.mxu0 %v103
  %187 = vmatprep.subr.bf16.mxu0 0
  %188 = vmatpush1.bf16.msra.mxu0 %v104
  %189 = vmatprep.subr.bf16.mxu0 0
  %190 = vmatpush1.bf16.msra.mxu0 0
  %191 = vmatprep.subr.bf16.mxu0 0
  %192 = vmatpush1.bf16.msra.mxu0 0
  %193 = vmatprep.subr.bf16.mxu0 0
  %194 = vmatpush1.bf16.msra.mxu0 0
  %195 = vmatprep.subr.bf16.mxu0 0
  %196 = vmatpush1.bf16.msra.mxu0 0
  %197 = vmatprep.subr.bf16.mxu0 0
  %198 = vmatpush1.bf16.msra.mxu0 0
  %199 = vmatprep.subr.bf16.mxu0 0
  %200 = vmatpush1.bf16.msra.mxu0 0
  %201 = vmatprep.subr.bf16.mxu0 0
  %202 = vmatpush1.bf16.msra.mxu0 0
  %203 = vmatprep.subr.bf16.mxu0 0
  %204 = vmatpush1.bf16.msra.mxu0 0
  %205 = vmatprep.subr.bf16.mxu0 0
  %206 = vmatpush1.bf16.msra.mxu0 0
  %207 = vmatprep.subr.bf16.mxu0 0
  %208 = vmatpush1.bf16.msra.mxu0 0
  %209 = vmatprep.subr.bf16.mxu0 0
  %210 = vmatpush1.bf16.msra.mxu0 0
  %211 = vmatprep.subr.bf16.mxu0 0
  %212 = vmatpush1.bf16.msra.mxu0 0
  %213 = vmatprep.subr.bf16.mxu0 0
  %214 = vmatpush1.bf16.msra.mxu0 0
  %215 = vmatprep.subr.bf16.mxu0 0
  %216 = vmatpush1.bf16.msra.mxu0 0
  %217 = vmatprep.mubr.bf16.mxu0 0
  %218 = vmatmul.mubr.bf16.gmra.mrb[0].mxu0 %v183
  %v219 = vpop.f32.mrb[0].mxu0
  %v220 = vadd.f32 0.0, %v219
  %v221 = vpop.f32.mrb[0].mxu0
  %v222 = vpop.f32.mrb[0].mxu0
  %v223 = vpop.f32.mrb[0].mxu0
  %224 = vdwg.mxu0
  %v226 = vrot.slane %v220, 6
  %v228 = vadd.f32 %v86, %v226
  %v229 = vmul.f32 %v228, 0.5
  %v230 = vtanh.pop %v229
  %v231 = vadd.f32 %v230, 1.0
  %v232 = vmul.f32 %v231, 0.5
  %v233 = vtanh.pop %v228
  %v235 = vrot.slane %v171, 6
  %v237 = vmul.f32 %v232, %v235
  %239 = vrot.lane.b32.xlu0 %v233, 64
  %v240 = vpop.permute.xlu0 %239
  %v242 = vmul.f32 %v232, %v240
  %244 = vrot.lane.b32.xlu0 %v242, 32
  %v245 = vpop.permute.xlu0 %244
  %v247 = vadd.f32 %v237, %v245
  %v248 = vtanh.pop %v247
  %250 = vrot.lane.b32.xlu0 %v248, 64
  %v251 = vpop.permute.xlu0 %250
  %v253 = vmul.f32 %v232, %v251
  %v254 = vpack.c.bf16 %v253, %v253
  %v256 = vrot.slane %v254, 1
  %257 = vrot.lane.b32.xlu0 %v256, 32
  %v258 = vpop.permute.xlu0 %257
  %v260 = vsel %vm107, %v258, 0
  %262 = vmatprep.subr.bf16.mxu0 0
  %263 = vmatpush1.bf16.msra.mxu0 %v103
  %264 = vmatprep.subr.bf16.mxu0 0
  %265 = vmatpush1.bf16.msra.mxu0 %v104
  %266 = vmatprep.subr.bf16.mxu0 0
  %267 = vmatpush1.bf16.msra.mxu0 0
  %268 = vmatprep.subr.bf16.mxu0 0
  %269 = vmatpush1.bf16.msra.mxu0 0
  %270 = vmatprep.subr.bf16.mxu0 0
  %271 = vmatpush1.bf16.msra.mxu0 0
  %272 = vmatprep.subr.bf16.mxu0 0
  %273 = vmatpush1.bf16.msra.mxu0 0
  %274 = vmatprep.subr.bf16.mxu0 0
  %275 = vmatpush1.bf16.msra.mxu0 0
  %276 = vmatprep.subr.bf16.mxu0 0
  %277 = vmatpush1.bf16.msra.mxu0 0
  %278 = vmatprep.subr.bf16.mxu0 0
  %279 = vmatpush1.bf16.msra.mxu0 0
  %280 = vmatprep.subr.bf16.mxu0 0
  %281 = vmatpush1.bf16.msra.mxu0 0
  %282 = vmatprep.subr.bf16.mxu0 0
  %283 = vmatpush1.bf16.msra.mxu0 0
  %284 = vmatprep.subr.bf16.mxu0 0
  %285 = vmatpush1.bf16.msra.mxu0 0
  %286 = vmatprep.subr.bf16.mxu0 0
  %287 = vmatpush1.bf16.msra.mxu0 0
  %288 = vmatprep.subr.bf16.mxu0 0
  %289 = vmatpush1.bf16.msra.mxu0 0
  %290 = vmatprep.subr.bf16.mxu0 0
  %291 = vmatpush1.bf16.msra.mxu0 0
  %292 = vmatprep.subr.bf16.mxu0 0
  %293 = vmatpush1.bf16.msra.mxu0 0
  %294 = vmatprep.mubr.bf16.mxu0 0
  %295 = vmatmul.mubr.bf16.gmra.mrb[0].mxu0 %v260
  %v296 = vpop.f32.mrb[0].mxu0
  %v297 = vadd.f32 0.0, %v296
  %v298 = vpop.f32.mrb[0].mxu0
  %v299 = vpop.f32.mrb[0].mxu0
  %v300 = vpop.f32.mrb[0].mxu0
  %301 = vdwg.mxu0
  %v303 = vrot.slane %v297, 4
  %v305 = vadd.f32 %v86, %v303
  %v306 = vmul.f32 %v305, 0.5
  %v307 = vtanh.pop %v306
  %v308 = vadd.f32 %v307, 1.0
  %v309 = vmul.f32 %v308, 0.5
  %v310 = vtanh.pop %v305
  %v312 = vrot.slane %v247, 6
  %v314 = vmul.f32 %v309, %v312
  %316 = vrot.lane.b32.xlu0 %v310, 64
  %v317 = vpop.permute.xlu0 %316
  %v319 = vmul.f32 %v309, %v317
  %321 = vrot.lane.b32.xlu0 %v319, 32
  %v322 = vpop.permute.xlu0 %321
  %v324 = vadd.f32 %v314, %v322
  %v325 = vtanh.pop %v324
  %327 = vrot.lane.b32.xlu0 %v325, 64
  %v328 = vpop.permute.xlu0 %327
  %v330 = vmul.f32 %v309, %v328
  %v331 = vpack.c.bf16 %v330, %v330
  %v333 = vrot.slane %v331, 2
  %334 = vrot.lane.b32.xlu0 %v333, 32
  %v335 = vpop.permute.xlu0 %334
  %v337 = vsel %vm107, %v335, 0
  %339 = vmatprep.subr.bf16.mxu0 0
  %340 = vmatpush1.bf16.msra.mxu0 %v103
  %341 = vmatprep.subr.bf16.mxu0 0
  %342 = vmatpush1.bf16.msra.mxu0 %v104
  %343 = vmatprep.subr.bf16.mxu0 0
  %344 = vmatpush1.bf16.msra.mxu0 0
  %345 = vmatprep.subr.bf16.mxu0 0
  %346 = vmatpush1.bf16.msra.mxu0 0
  %347 = vmatprep.subr.bf16.mxu0 0
  %348 = vmatpush1.bf16.msra.mxu0 0
  %349 = vmatprep.subr.bf16.mxu0 0
  %350 = vmatpush1.bf16.msra.mxu0 0
  %351 = vmatprep.subr.bf16.mxu0 0
  %352 = vmatpush1.bf16.msra.mxu0 0
  %353 = vmatprep.subr.bf16.mxu0 0
  %354 = vmatpush1.bf16.msra.mxu0 0
  %355 = vmatprep.subr.bf16.mxu0 0
  %356 = vmatpush1.bf16.msra.mxu0 0
  %357 = vmatprep.subr.bf16.mxu0 0
  %358 = vmatpush1.bf16.msra.mxu0 0
  %359 = vmatprep.subr.bf16.mxu0 0
  %360 = vmatpush1.bf16.msra.mxu0 0
  %361 = vmatprep.subr.bf16.mxu0 0
  %362 = vmatpush1.bf16.msra.mxu0 0
  %363 = vmatprep.subr.bf16.mxu0 0
  %364 = vmatpush1.bf16.msra.mxu0 0
  %365 = vmatprep.subr.bf16.mxu0 0
  %366 = vmatpush1.bf16.msra.mxu0 0
  %367 = vmatprep.subr.bf16.mxu0 0
  %368 = vmatpush1.bf16.msra.mxu0 0
  %369 = vmatprep.subr.bf16.mxu0 0
  %370 = vmatpush1.bf16.msra.mxu0 0
  %371 = vmatprep.mubr.bf16.mxu0 0
  %372 = vmatmul.mubr.bf16.gmra.mrb[0].mxu0 %v337
  %v373 = vpop.f32.mrb[0].mxu0
  %v374 = vadd.f32 0.0, %v373
  %v375 = vpop.f32.mrb[0].mxu0
  %v376 = vpop.f32.mrb[0].mxu0
  %v377 = vpop.f32.mrb[0].mxu0
  %378 = vdwg.mxu0
  %v380 = vrot.slane %v374, 2
  %v382 = vadd.f32 %v86, %v380
  %v383 = vmul.f32 %v382, 0.5
  %v384 = vtanh.pop %v383
  %v385 = vadd.f32 %v384, 1.0
  %v386 = vmul.f32 %v385, 0.5
  %v387 = vtanh.pop %v382
  %v389 = vrot.slane %v324, 6
  %v391 = vmul.f32 %v386, %v389
  %393 = vrot.lane.b32.xlu0 %v387, 64
  %v394 = vpop.permute.xlu0 %393
  %v396 = vmul.f32 %v386, %v394
  %398 = vrot.lane.b32.xlu0 %v396, 32
  %v399 = vpop.permute.xlu0 %398
  %v401 = vadd.f32 %v391, %v399
  %v402 = vtanh.pop %v401
  %404 = vrot.lane.b32.xlu0 %v402, 64
  %v405 = vpop.permute.xlu0 %404
  %v407 = vmul.f32 %v386, %v405
  %v408 = vpack.c.bf16 %v407, %v407
  %v410 = vrot.slane %v408, 3
  %411 = vrot.lane.b32.xlu0 %v410, 32
  %v412 = vpop.permute.xlu0 %411
  %v414 = vsel %vm107, %v412, 0
  %416 = vmatprep.subr.bf16.mxu0 0
  %417 = vmatpush1.bf16.msra.mxu0 %v103
  %418 = vmatprep.subr.bf16.mxu0 0
  %419 = vmatpush1.bf16.msra.mxu0 %v104
  %420 = vmatprep.subr.bf16.mxu0 0
  %421 = vmatpush1.bf16.msra.mxu0 0
  %422 = vmatprep.subr.bf16.mxu0 0
  %423 = vmatpush1.bf16.msra.mxu0 0
  %424 = vmatprep.subr.bf16.mxu0 0
  %425 = vmatpush1.bf16.msra.mxu0 0
  %426 = vmatprep.subr.bf16.mxu0 0
  %427 = vmatpush1.bf16.msra.mxu0 0
  %428 = vmatprep.subr.bf16.mxu0 0
  %429 = vmatpush1.bf16.msra.mxu0 0
  %430 = vmatprep.subr.bf16.mxu0 0
  %431 = vmatpush1.bf16.msra.mxu0 0
  %432 = vmatprep.subr.bf16.mxu0 0
  %433 = vmatpush1.bf16.msra.mxu0 0
  %434 = vmatprep.subr.bf16.mxu0 0
  %435 = vmatpush1.bf16.msra.mxu0 0
  %436 = vmatprep.subr.bf16.mxu0 0
  %437 = vmatpush1.bf16.msra.mxu0 0
  %438 = vmatprep.subr.bf16.mxu0 0
  %439 = vmatpush1.bf16.msra.mxu0 0
  %440 = vmatprep.subr.bf16.mxu0 0
  %441 = vmatpush1.bf16.msra.mxu0 0
  %442 = vmatprep.subr.bf16.mxu0 0
  %443 = vmatpush1.bf16.msra.mxu0 0
  %444 = vmatprep.subr.bf16.mxu0 0
  %445 = vmatpush1.bf16.msra.mxu0 0
  %446 = vmatprep.subr.bf16.mxu0 0
  %447 = vmatpush1.bf16.msra.mxu0 0
  %448 = vmatprep.mubr.bf16.mxu0 0
  %449 = vmatmul.mubr.bf16.gmra.mrb[0].mxu0 %v414
  %v450 = vpop.f32.mrb[0].mxu0
  %v451 = vadd.f32 0.0, %v450
  %v452 = vpop.f32.mrb[0].mxu0
  %v453 = vpop.f32.mrb[0].mxu0
  %v454 = vpop.f32.mrb[0].mxu0
  %455 = vdwg.mxu0
  %v456 = vadd.f32 %v89, %v451
  %v457 = vmul.f32 %v456, 0.5
  %v458 = vtanh.pop %v457
  %v459 = vadd.f32 %v458, 1.0
  %v460 = vmul.f32 %v459, 0.5
  %v461 = vtanh.pop %v456
  %v463 = vrot.slane %v401, 6
  %v465 = vmul.f32 %v460, %v463
  %467 = vrot.lane.b32.xlu0 %v461, 64
  %v468 = vpop.permute.xlu0 %467
  %v470 = vmul.f32 %v460, %v468
  %472 = vrot.lane.b32.xlu0 %v470, 32
  %v473 = vpop.permute.xlu0 %472
  %v475 = vadd.f32 %v465, %v473
  %v476 = vtanh.pop %v475
  %478 = vrot.lane.b32.xlu0 %v476, 64
  %v479 = vpop.permute.xlu0 %478
  %v481 = vmul.f32 %v460, %v479
  %v482 = vpack.c.bf16 %v481, %v481
  %484 = vrot.lane.b32.xlu0 %v482, 32
  %v485 = vpop.permute.xlu0 %484
  %v487 = vsel %vm107, %v485, 0
  %489 = vmatprep.subr.bf16.mxu0 0
  %490 = vmatpush1.bf16.msra.mxu0 %v103
  %491 = vmatprep.subr.bf16.mxu0 0
  %492 = vmatpush1.bf16.msra.mxu0 %v104
  %493 = vmatprep.subr.bf16.mxu0 0
  %494 = vmatpush1.bf16.msra.mxu0 0
  %495 = vmatprep.subr.bf16.mxu0 0
  %496 = vmatpush1.bf16.msra.mxu0 0
  %497 = vmatprep.subr.bf16.mxu0 0
  %498 = vmatpush1.bf16.msra.mxu0 0
  %499 = vmatprep.subr.bf16.mxu0 0
  %500 = vmatpush1.bf16.msra.mxu0 0
  %501 = vmatprep.subr.bf16.mxu0 0
  %502 = vmatpush1.bf16.msra.mxu0 0
  %503 = vmatprep.subr.bf16.mxu0 0
  %504 = vmatpush1.bf16.msra.mxu0 0
  %505 = vmatprep.subr.bf16.mxu0 0
  %506 = vmatpush1.bf16.msra.mxu0 0
  %507 = vmatprep.subr.bf16.mxu0 0
  %508 = vmatpush1.bf16.msra.mxu0 0
  %509 = vmatprep.subr.bf16.mxu0 0
  %510 = vmatpush1.bf16.msra.mxu0 0
  %511 = vmatprep.subr.bf16.mxu0 0
  %512 = vmatpush1.bf16.msra.mxu0 0
  %513 = vmatprep.subr.bf16.mxu0 0
  %514 = vmatpush1.bf16.msra.mxu0 0
  %515 = vmatprep.subr.bf16.mxu0 0
  %516 = vmatpush1.bf16.msra.mxu0 0
  %517 = vmatprep.subr.bf16.mxu0 0
  %518 = vmatpush1.bf16.msra.mxu0 0
  %519 = vmatprep.subr.bf16.mxu0 0
  %520 = vmatpush1.bf16.msra.mxu0 0
  %521 = vmatprep.mubr.bf16.mxu0 0
  %522 = vmatmul.mubr.bf16.gmra.mrb[0].mxu0 %v487
  %v523 = vpop.f32.mrb[0].mxu0
  %v524 = vadd.f32 0.0, %v523
  %v525 = vpop.f32.mrb[0].mxu0
  %v526 = vpop.f32.mrb[0].mxu0
  %v527 = vpop.f32.mrb[0].mxu0
  %528 = vdwg.mxu0
  %v530 = vrot.slane %v524, 6
  %v532 = vadd.f32 %v89, %v530
  %v533 = vmul.f32 %v532, 0.5
  %v534 = vtanh.pop %v533
  %v535 = vadd.f32 %v534, 1.0
  %v536 = vmul.f32 %v535, 0.5
  %v537 = vtanh.pop %v532
  %v539 = vrot.slane %v475, 6
  %v541 = vmul.f32 %v536, %v539
  %543 = vrot.lane.b32.xlu0 %v537, 64
  %v544 = vpop.permute.xlu0 %543
  %v546 = vmul.f32 %v536, %v544
  %548 = vrot.lane.b32.xlu0 %v546, 32
  %v549 = vpop.permute.xlu0 %548
  %v551 = vadd.f32 %v541, %v549
  %v552 = vtanh.pop %v551
  %554 = vrot.lane.b32.xlu0 %v552, 64
  %v555 = vpop.permute.xlu0 %554
  %v557 = vmul.f32 %v536, %v555
  %v558 = vpack.c.bf16 %v557, %v557
  %v560 = vrot.slane %v558, 1
  %561 = vrot.lane.b32.xlu0 %v560, 32
  %v562 = vpop.permute.xlu0 %561
  %v564 = vsel %vm107, %v562, 0
  %566 = vmatprep.subr.bf16.mxu0 0
  %567 = vmatpush1.bf16.msra.mxu0 %v103
  %568 = vmatprep.subr.bf16.mxu0 0
  %569 = vmatpush1.bf16.msra.mxu0 %v104
  %570 = vmatprep.subr.bf16.mxu0 0
  %571 = vmatpush1.bf16.msra.mxu0 0
  %572 = vmatprep.subr.bf16.mxu0 0
  %573 = vmatpush1.bf16.msra.mxu0 0
  %574 = vmatprep.subr.bf16.mxu0 0
  %575 = vmatpush1.bf16.msra.mxu0 0
  %576 = vmatprep.subr.bf16.mxu0 0
  %577 = vmatpush1.bf16.msra.mxu0 0
  %578 = vmatprep.subr.bf16.mxu0 0
  %579 = vmatpush1.bf16.msra.mxu0 0
  %580 = vmatprep.subr.bf16.mxu0 0
  %581 = vmatpush1.bf16.msra.mxu0 0
  %582 = vmatprep.subr.bf16.mxu0 0
  %583 = vmatpush1.bf16.msra.mxu0 0
  %584 = vmatprep.subr.bf16.mxu0 0
  %585 = vmatpush1.bf16.msra.mxu0 0
  %586 = vmatprep.subr.bf16.mxu0 0
  %587 = vmatpush1.bf16.msra.mxu0 0
  %588 = vmatprep.subr.bf16.mxu0 0
  %589 = vmatpush1.bf16.msra.mxu0 0
  %590 = vmatprep.subr.bf16.mxu0 0
  %591 = vmatpush1.bf16.msra.mxu0 0
  %592 = vmatprep.subr.bf16.mxu0 0
  %593 = vmatpush1.bf16.msra.mxu0 0
  %594 = vmatprep.subr.bf16.mxu0 0
  %595 = vmatpush1.bf16.msra.mxu0 0
  %596 = vmatprep.subr.bf16.mxu0 0
  %597 = vmatpush1.bf16.msra.mxu0 0
  %598 = vmatprep.mubr.bf16.mxu0 0
  %599 = vmatmul.mubr.bf16.gmra.mrb[0].mxu0 %v564
  %v600 = vpop.f32.mrb[0].mxu0
  %v601 = vadd.f32 0.0, %v600
  %v602 = vpop.f32.mrb[0].mxu0
  %v603 = vpop.f32.mrb[0].mxu0
  %v604 = vpop.f32.mrb[0].mxu0
  %605 = vdwg.mxu0
  %v607 = vrot.slane %v601, 4
  %v609 = vadd.f32 %v89, %v607
  %v610 = vmul.f32 %v609, 0.5
  %v611 = vtanh.pop %v610
  %v612 = vadd.f32 %v611, 1.0
  %v613 = vmul.f32 %v612, 0.5
  %v614 = vtanh.pop %v609
  %v616 = vrot.slane %v551, 6
  %v618 = vmul.f32 %v613, %v616
  %620 = vrot.lane.b32.xlu0 %v614, 64
  %v621 = vpop.permute.xlu0 %620
  %v623 = vmul.f32 %v613, %v621
  %625 = vrot.lane.b32.xlu0 %v623, 32
  %v626 = vpop.permute.xlu0 %625
  %v628 = vadd.f32 %v618, %v626
  %v629 = vtanh.pop %v628
  %631 = vrot.lane.b32.xlu0 %v629, 64
  %v632 = vpop.permute.xlu0 %631
  %v634 = vmul.f32 %v613, %v632
  %v635 = vpack.c.bf16 %v634, %v634
  %v637 = vrot.slane %v635, 2
  %638 = vrot.lane.b32.xlu0 %v637, 32
  %v639 = vpop.permute.xlu0 %638
  %v641 = vsel %vm107, %v639, 0
  %643 = vmatprep.subr.bf16.mxu0 0
  %644 = vmatpush1.bf16.msra.mxu0 %v103
  %645 = vmatprep.subr.bf16.mxu0 0
  %646 = vmatpush1.bf16.msra.mxu0 %v104
  %647 = vmatprep.subr.bf16.mxu0 0
  %648 = vmatpush1.bf16.msra.mxu0 0
  %649 = vmatprep.subr.bf16.mxu0 0
  %650 = vmatpush1.bf16.msra.mxu0 0
  %651 = vmatprep.subr.bf16.mxu0 0
  %652 = vmatpush1.bf16.msra.mxu0 0
  %653 = vmatprep.subr.bf16.mxu0 0
  %654 = vmatpush1.bf16.msra.mxu0 0
  %655 = vmatprep.subr.bf16.mxu0 0
  %656 = vmatpush1.bf16.msra.mxu0 0
  %657 = vmatprep.subr.bf16.mxu0 0
  %658 = vmatpush1.bf16.msra.mxu0 0
  %659 = vmatprep.subr.bf16.mxu0 0
  %660 = vmatpush1.bf16.msra.mxu0 0
  %661 = vmatprep.subr.bf16.mxu0 0
  %662 = vmatpush1.bf16.msra.mxu0 0
  %663 = vmatprep.subr.bf16.mxu0 0
  %664 = vmatpush1.bf16.msra.mxu0 0
  %665 = vmatprep.subr.bf16.mxu0 0
  %666 = vmatpush1.bf16.msra.mxu0 0
  %667 = vmatprep.subr.bf16.mxu0 0
  %668 = vmatpush1.bf16.msra.mxu0 0
  %669 = vmatprep.subr.bf16.mxu0 0
  %670 = vmatpush1.bf16.msra.mxu0 0
  %671 = vmatprep.subr.bf16.mxu0 0
  %672 = vmatpush1.bf16.msra.mxu0 0
  %673 = vmatprep.subr.bf16.mxu0 0
  %674 = vmatpush1.bf16.msra.mxu0 0
  %675 = vmatprep.mubr.bf16.mxu0 0
  %676 = vmatmul.mubr.bf16.gmra.mrb[0].mxu0 %v641
  %v677 = vpop.f32.mrb[0].mxu0
  %v678 = vadd.f32 0.0, %v677
  %v679 = vpop.f32.mrb[0].mxu0
  %v680 = vpop.f32.mrb[0].mxu0
  %v681 = vpop.f32.mrb[0].mxu0
  %682 = vdwg.mxu0
  %v684 = vrot.slane %v678, 2
  %v686 = vadd.f32 %v89, %v684
  %v687 = vmul.f32 %v686, 0.5
  %v688 = vtanh.pop %v687
  %v689 = vadd.f32 %v688, 1.0
  %v690 = vmul.f32 %v689, 0.5
  %v691 = vtanh.pop %v686
  %v693 = vrot.slane %v628, 6
  %v695 = vmul.f32 %v690, %v693
  %697 = vrot.lane.b32.xlu0 %v691, 64
  %v698 = vpop.permute.xlu0 %697
  %v700 = vmul.f32 %v690, %v698
  %702 = vrot.lane.b32.xlu0 %v700, 32
  %v703 = vpop.permute.xlu0 %702
  %v705 = vadd.f32 %v695, %v703
  %v706 = vtanh.pop %v705
  %708 = vrot.lane.b32.xlu0 %v706, 64
  %v709 = vpop.permute.xlu0 %708
  %v711 = vmul.f32 %v690, %v709
  %v712 = vld [vmem:[%s4] sm:$0xff]
  %v713 = vld [vmem:[%s4 + $0x8] sm:$0xff]
  %v714 = vld [vmem:[%s4 + $0x10] sm:$0xff]
  %v715 = vld [vmem:[%s4 + $0x18] sm:$0xff]
  %v716 = vld [vmem:[%s4 + $0x20] sm:$0x1]
  %v717 = vlaneseq
  %v718 = vshrl.u32 %v717, 7
  %v719 = vsub.s32 0, %v718
  %v720 = vrot.slane %v716, %v719
  %v722 = vrot.slane %v711, 6
  %723 = vrot.lane.b32.xlu0 %v722, 32
  %v724 = vpop.permute.xlu0 %723
  %v725 = vsel %vm107, %v724, 0
  %727 = vmatprep.subr.mxu0 0.0
  %728 = vmatpush1.msra.mxu0 %v712
  %729 = vmatprep.subr.mxu0 0.0
  %730 = vmatpush1.msra.mxu0 %v713
  %731 = vmatprep.subr.mxu0 0.0
  %732 = vmatpush1.msra.mxu0 %v714
  %733 = vmatprep.subr.mxu0 0.0
  %734 = vmatpush1.msra.mxu0 %v715
  %735 = vmatprep.subr.mxu0 0.0
  %736 = vmatpush1.msra.mxu0 0.0
  %737 = vmatprep.subr.mxu0 0.0
  %738 = vmatpush1.msra.mxu0 0.0
  %739 = vmatprep.subr.mxu0 0.0
  %740 = vmatpush1.msra.mxu0 0.0
  %741 = vmatprep.subr.mxu0 0.0
  %742 = vmatpush1.msra.mxu0 0.0
  %743 = vmatprep.subr.mxu0 0.0
  %744 = vmatpush1.msra.mxu0 0.0
  %745 = vmatprep.subr.mxu0 0.0
  %746 = vmatpush1.msra.mxu0 0.0
  %747 = vmatprep.subr.mxu0 0.0
  %748 = vmatpush1.msra.mxu0 0.0
  %749 = vmatprep.subr.mxu0 0.0
  %750 = vmatpush1.msra.mxu0 0.0
  %751 = vmatprep.subr.mxu0 0.0
  %752 = vmatpush1.msra.mxu0 0.0
  %753 = vmatprep.subr.mxu0 0.0
  %754 = vmatpush1.msra.mxu0 0.0
  %755 = vmatprep.subr.mxu0 0.0
  %756 = vmatpush1.msra.mxu0 0.0
  %757 = vmatprep.subr.mxu0 0.0
  %758 = vmatpush1.msra.mxu0 0.0
  %759 = vmatprep.subr.mxu0 0.0
  %760 = vmatpush1.msra.mxu0 0.0
  %761 = vmatprep.subr.mxu0 0.0
  %762 = vmatpush1.msra.mxu0 0.0
  %763 = vmatprep.subr.mxu0 0.0
  %764 = vmatpush1.msra.mxu0 0.0
  %765 = vmatprep.subr.mxu0 0.0
  %766 = vmatpush1.msra.mxu0 0.0
  %767 = vmatprep.subr.mxu0 0.0
  %768 = vmatpush1.msra.mxu0 0.0
  %769 = vmatprep.subr.mxu0 0.0
  %770 = vmatpush1.msra.mxu0 0.0
  %771 = vmatprep.subr.mxu0 0.0
  %772 = vmatpush1.msra.mxu0 0.0
  %773 = vmatprep.subr.mxu0 0.0
  %774 = vmatpush1.msra.mxu0 0.0
  %775 = vmatprep.subr.mxu0 0.0
  %776 = vmatpush1.msra.mxu0 0.0
  %777 = vmatprep.subr.mxu0 0.0
  %778 = vmatpush1.msra.mxu0 0.0
  %779 = vmatprep.subr.mxu0 0.0
  %780 = vmatpush1.msra.mxu0 0.0
  %781 = vmatprep.subr.mxu0 0.0
  %782 = vmatpush1.msra.mxu0 0.0
  %783 = vmatprep.subr.mxu0 0.0
  %784 = vmatpush1.msra.mxu0 0.0
  %785 = vmatprep.subr.mxu0 0.0
  %786 = vmatpush1.msra.mxu0 0.0
  %787 = vmatprep.subr.mxu0 0.0
  %788 = vmatpush1.msra.mxu0 0.0
  %789 = vmatprep.subr.mxu0 0.0
  %790 = vmatpush1.msra.mxu0 0.0
  %791 = vmatprep.mubr.f32.mxu0 0.0
  %792 = vmatmul.mubr.f32.gmra.mrb[0].mxu0 %v725
  %v793 = vpop.f32.mrb[0].mxu0
  %v794 = vadd.f32 %v720, %v793
  %v795 = vpop.f32.mrb[0].mxu0
  %796 = vdwg.mxu0
  %vm797 = vcmask 58368
  %v798 = vsel %vm797, %v794, -inf
  %799 = vmax.xlane.f32.xlu0 %v798
  %v800 = vpop.xlane.xlu0 %799
  %v801 = vsub.f32 %v794, %v800
  %v802 = vmul.f32 %v801, 1.442695
  %v803 = vpow.pop %v802
  %v804 = vsel %vm797, %v803, 0.0
  %805 = vadd.xlane.f32.xlu0 %v804
  %v806 = vpop.xlane.xlu0 %805
  %v807 = vrcp.pop %v806
  %v808 = vmul.f32 %v803, %v807
  %810 = vset.pattern.permute.xlu0 0
  %811 = vperm.xlu0 %810, %v808
  %v812 = vpop.permute.xlu0 %811
  %v814 = vmul.f32 %v812, %v177
  %815 = vset.pattern.permute.xlu0 1
  %816 = vperm.xlu0 %815, %v808
  %v817 = vpop.permute.xlu0 %816
  %v820 = vrot.slane %v253, 2
  %821 = vrot.lane.b32.xlu0 %v820, 32
  %v822 = vpop.permute.xlu0 %821
  %v824 = vmul.f32 %v817, %v822
  %826 = vrot.lane.b32.xlu0 %v824, 96
  %v827 = vpop.permute.xlu0 %826
  %v829 = vadd.f32 %v814, %v827
  %830 = vset.pattern.permute.xlu0 2
  %831 = vperm.xlu0 %830, %v808
  %v832 = vpop.permute.xlu0 %831
  %v835 = vrot.slane %v330, 4
  %836 = vrot.lane.b32.xlu0 %v835, 32
  %v837 = vpop.permute.xlu0 %836
  %v839 = vmul.f32 %v832, %v837
  %841 = vrot.lane.b32.xlu0 %v839, 96
  %v842 = vpop.permute.xlu0 %841
  %v844 = vadd.f32 %v829, %v842
  %845 = vset.pattern.permute.xlu0 3
  %846 = vperm.xlu0 %845, %v808
  %v847 = vpop.permute.xlu0 %846
  %v850 = vrot.slane %v407, 6
  %851 = vrot.lane.b32.xlu0 %v850, 32
  %v852 = vpop.permute.xlu0 %851
  %v854 = vmul.f32 %v847, %v852
  %856 = vrot.lane.b32.xlu0 %v854, 96
  %v857 = vpop.permute.xlu0 %856
  %v859 = vadd.f32 %v844, %v857
  %860 = vset.pattern.permute.xlu0 4
  %861 = vperm.xlu0 %860, %v808
  %v862 = vpop.permute.xlu0 %861
  %v864 = vmul.f32 %v862, %v481
  %v865 = vadd.f32 %v859, %v864
  %866 = vset.pattern.permute.xlu0 5
  %867 = vperm.xlu0 %866, %v808
  %v868 = vpop.permute.xlu0 %867
  %v871 = vrot.slane %v557, 2
  %872 = vrot.lane.b32.xlu0 %v871, 32
  %v873 = vpop.permute.xlu0 %872
  %v875 = vmul.f32 %v868, %v873
  %877 = vrot.lane.b32.xlu0 %v875, 96
  %v878 = vpop.permute.xlu0 %877
  %v880 = vadd.f32 %v865, %v878
  %881 = vset.pattern.permute.xlu0 6
  %882 = vperm.xlu0 %881, %v808
  %v883 = vpop.permute.xlu0 %882
  %v886 = vrot.slane %v634, 4
  %887 = vrot.lane.b32.xlu0 %v886, 32
  %v888 = vpop.permute.xlu0 %887
  %v890 = vmul.f32 %v883, %v888
  %892 = vrot.lane.b32.xlu0 %v890, 96
  %v893 = vpop.permute.xlu0 %892
  %v895 = vadd.f32 %v880, %v893
  %896 = vset.pattern.permute.xlu0 7
  %897 = vperm.xlu0 %896, %v808
  %v898 = vpop.permute.xlu0 %897
  %v901 = vmul.f32 %v898, %v724
  %903 = vrot.lane.b32.xlu0 %v901, 96
  %v904 = vpop.permute.xlu0 %903
  %v906 = vadd.f32 %v895, %v904
  %908 = vrot.lane.b32.xlu0 %v906, 32
  %v909 = vpop.permute.xlu0 %908
  %914 = vrot.lane.b32.xlu0 %v712, 120
  %v915 = vpop.permute.xlu0 %914
  %916 = vrot.lane.b32.xlu0 %v713, 120
  %v917 = vpop.permute.xlu0 %916
  %918 = vrot.lane.b32.xlu0 %v714, 120
  %v919 = vpop.permute.xlu0 %918
  %920 = vrot.lane.b32.xlu0 %v715, 120
  %v921 = vpop.permute.xlu0 %920
  %927 = vrot.lane.b32.xlu0 %v720, 120
  %v928 = vpop.permute.xlu0 %927
  %v930 = vsel %vm107, %v909, 0
  %932 = vmatprep.subr.mxu0 0.0
  %933 = vmatpush1.msra.mxu0 %v915
  %934 = vmatprep.subr.mxu0 0.0
  %935 = vmatpush1.msra.mxu0 %v917
  %936 = vmatprep.subr.mxu0 0.0
  %937 = vmatpush1.msra.mxu0 %v919
  %938 = vmatprep.subr.mxu0 0.0
  %939 = vmatpush1.msra.mxu0 %v921
  %940 = vmatprep.subr.mxu0 0.0
  %941 = vmatpush1.msra.mxu0 0.0
  %942 = vmatprep.subr.mxu0 0.0
  %943 = vmatpush1.msra.mxu0 0.0
  %944 = vmatprep.subr.mxu0 0.0
  %945 = vmatpush1.msra.mxu0 0.0
  %946 = vmatprep.subr.mxu0 0.0
  %947 = vmatpush1.msra.mxu0 0.0
  %948 = vmatprep.subr.mxu0 0.0
  %949 = vmatpush1.msra.mxu0 0.0
  %950 = vmatprep.subr.mxu0 0.0
  %951 = vmatpush1.msra.mxu0 0.0
  %952 = vmatprep.subr.mxu0 0.0
  %953 = vmatpush1.msra.mxu0 0.0
  %954 = vmatprep.subr.mxu0 0.0
  %955 = vmatpush1.msra.mxu0 0.0
  %956 = vmatprep.subr.mxu0 0.0
  %957 = vmatpush1.msra.mxu0 0.0
  %958 = vmatprep.subr.mxu0 0.0
  %959 = vmatpush1.msra.mxu0 0.0
  %960 = vmatprep.subr.mxu0 0.0
  %961 = vmatpush1.msra.mxu0 0.0
  %962 = vmatprep.subr.mxu0 0.0
  %963 = vmatpush1.msra.mxu0 0.0
  %964 = vmatprep.subr.mxu0 0.0
  %965 = vmatpush1.msra.mxu0 0.0
  %966 = vmatprep.subr.mxu0 0.0
  %967 = vmatpush1.msra.mxu0 0.0
  %968 = vmatprep.subr.mxu0 0.0
  %969 = vmatpush1.msra.mxu0 0.0
  %970 = vmatprep.subr.mxu0 0.0
  %971 = vmatpush1.msra.mxu0 0.0
  %972 = vmatprep.subr.mxu0 0.0
  %973 = vmatpush1.msra.mxu0 0.0
  %974 = vmatprep.subr.mxu0 0.0
  %975 = vmatpush1.msra.mxu0 0.0
  %976 = vmatprep.subr.mxu0 0.0
  %977 = vmatpush1.msra.mxu0 0.0
  %978 = vmatprep.subr.mxu0 0.0
  %979 = vmatpush1.msra.mxu0 0.0
  %980 = vmatprep.subr.mxu0 0.0
  %981 = vmatpush1.msra.mxu0 0.0
  %982 = vmatprep.subr.mxu0 0.0
  %983 = vmatpush1.msra.mxu0 0.0
  %984 = vmatprep.subr.mxu0 0.0
  %985 = vmatpush1.msra.mxu0 0.0
  %986 = vmatprep.subr.mxu0 0.0
  %987 = vmatpush1.msra.mxu0 0.0
  %988 = vmatprep.subr.mxu0 0.0
  %989 = vmatpush1.msra.mxu0 0.0
  %990 = vmatprep.subr.mxu0 0.0
  %991 = vmatpush1.msra.mxu0 0.0
  %992 = vmatprep.subr.mxu0 0.0
  %993 = vmatpush1.msra.mxu0 0.0
  %994 = vmatprep.subr.mxu0 0.0
  %995 = vmatpush1.msra.mxu0 0.0
  %996 = vmatprep.mubr.f32.mxu0 0.0
  %997 = vmatmul.mubr.f32.gmra.mrb[0].mxu0 %v930
  %v998 = vpop.f32.mrb[0].mxu0
  %v999 = vadd.f32 %v928, %v998
  %v1000 = vpop.f32.mrb[0].mxu0
  %1001 = vdwg.mxu0
  %1003 = vrot.lane.b32.xlu0 %v999, 8
  %v1004 = vpop.permute.xlu0 %1003
  %vm1006 = vcmask 64512
  %v1007 = vsel %vm1006, %v808, %v1004
  %vm1008 = vcmask 123904
  %1009 = vst.msk [vmem:[%s5] sm:$0x3] %vm1008, %v1007
  // Predicated region
  $region22: #{attention_forward.1} parent=0 // pred_check
    _
  $region23: #{attention_forward.1} parent=0 // pred_check_branch
    %1011 = sbr.rel (0) target = $region25
  $region24: #{attention_forward.1} parent=0 // pred_region
    _
  $region25: #{attention_forward.1} parent=0 // pred_fallthru
    _
  // Predicated region
  $region26: #{attention_forward.1} parent=0 // pred_check
    _
  $region27: #{attention_forward.1} parent=0 // pred_check_branch
    %1013 = sbr.rel (0) target = $region29
  $region28: #{attention_forward.1} parent=0 // pred_region
    _
  $region29: #{attention_forward.1} parent=0 // pred_fallthru
    _

</llo_original>
